<compile_context>
chip_gen: v7x
topology: tpu7x:2x2x1
jax: 0.10.0
libtpu: 0.0.40
codegen_flags: <defaults>
</compile_context>

<pallas_src>
import jax
import jax.numpy as jnp
from jax.experimental import pallas as pl
from jax.experimental.pallas import tpu as pltpu


def _round_up(n, m):
    return ((n + m - 1) // m) * m


def _mlp_kernel(x_ref, w1_ref, b1_ref, w2_ref, b2_ref, w3_ref, b3_ref, o_ref):
    x = x_ref[...]                                                 # (TB, 112)

    h1 = jnp.dot(x, w1_ref[...], preferred_element_type=jnp.float32)
    h1 = jnp.maximum(h1 + b1_ref[...], 0.0)                        # (TB, 64)

    h2 = jnp.dot(h1, w2_ref[...], preferred_element_type=jnp.float32)
    h2 = jnp.maximum(h2 + b2_ref[...], 0.0)                        # (TB, 64)

    # fc3 has out_features == 1: an N=1 MXU matmul wastes 127/255 of the MXU
    # output width.  Do it as a VPU elementwise multiply + XLU lane reduction
    # against the (1, 64) weight row instead.
    z = jnp.sum(h2 * w3_ref[...], axis=-1, keepdims=True) + b3_ref[...]  # (TB, 1)

    o_ref[...] = jax.nn.sigmoid(z)


def net_forward(x, params, *, block_b=2048):
    """x: (B, 112) float32. Returns sigmoid outputs, squeezed like PyTorch."""
    w1, b1, w2, b2, w3, b3 = params
    B, F = x.shape
    H1 = w1.shape[1]
    H2 = w2.shape[1]

    # fc3 weight as a (1, H2) row for the VPU reduction in the kernel.
    w3_row = jnp.reshape(w3, (1, H2))

    # Batch tile: large enough to amortize per-step overhead, but never
    # larger than the (8-aligned) batch itself.  Pad B up to a multiple of
    # the tile so every block is full; padded rows are sliced off afterwards.
    tb = min(block_b, _round_up(B, 8))
    b_pad = _round_up(B, tb)
    if b_pad != B:
        x = jnp.pad(x, ((0, b_pad - B), (0, 0)))
    grid = (b_pad // tb,)

    param_bytes = (w1.size + b1.size + w2.size + b2.size + w3.size + b3.size) * 4
    cost = pl.CostEstimate(
        flops=2 * b_pad * (F * H1 + H1 * H2 + H2),
        transcendentals=b_pad,                       # sigmoid exp per row
        bytes_accessed=b_pad * F * 4 + b_pad * 4 + param_bytes,
    )

    out = pl.pallas_call(
        _mlp_kernel,
        out_shape=jax.ShapeDtypeStruct((b_pad, 1), jnp.float32),
        grid=grid,
        in_specs=[
            pl.BlockSpec((tb, F), lambda i: (i, 0)),        # x streams by batch tile
            pl.BlockSpec((F, H1), lambda i: (0, 0)),        # W1 resident
            pl.BlockSpec((1, H1), lambda i: (0, 0)),        # b1 resident
            pl.BlockSpec((H1, H2), lambda i: (0, 0)),       # W2 resident
            pl.BlockSpec((1, H2), lambda i: (0, 0)),        # b2 resident
            pl.BlockSpec((1, H2), lambda i: (0, 0)),        # W3 row resident
            pl.BlockSpec((1, 1), lambda i: (0, 0)),         # b3 resident
        ],
        out_specs=pl.BlockSpec((tb, 1), lambda i: (i, 0)),
        compiler_params=pltpu.CompilerParams(
            dimension_semantics=("parallel",),
        ),
        cost_estimate=cost,
    )(x, w1, b1, w2, b2, w3_row, b3)

    # PyTorch's x.squeeze(): drops all size-1 dims -> (B,) for B > 1.
    return jnp.squeeze(out[:B, :])


def init_params(key):
    """Deterministic init mirroring nn.Linear's default U(-1/sqrt(fan_in), +)."""
    def linear(key, fan_in, fan_out):
        kw, kb = jax.random.split(key)
        bound = 1.0 / jnp.sqrt(jnp.float32(fan_in))
        w = jax.random.uniform(kw, (fan_in, fan_out), jnp.float32, -bound, bound)
        b = jax.random.uniform(kb, (1, fan_out), jnp.float32, -bound, bound)
        return w, b

    k1, k2, k3 = jax.random.split(key, 3)
    w1, b1 = linear(k1, 112, 64)
    w2, b2 = linear(k2, 64, 64)
    w3, b3 = linear(k3, 64, 1)
    return (w1, b1, w2, b2, w3, b3)


def _reference(x, params):
    w1, b1, w2, b2, w3, b3 = params
    h = jax.nn.relu(x @ w1 + b1)
    h = jax.nn.relu(h @ w2 + b2)
    return jnp.squeeze(jax.nn.sigmoid(h @ w3 + b3))


if __name__ == "__main__":
    key = jax.random.PRNGKey(0)
    k_params, k_x1, k_x2 = jax.random.split(key, 3)
    params = init_params(k_params)

    # Small batch (single grid step, tile == padded batch).
    x_small = jax.random.normal(k_x1, (8, 112), jnp.float32)
    y_small = jax.block_until_ready(net_forward(x_small, params))
    ref_small = _reference(x_small, params)
    assert y_small.shape == (8,), y_small.shape
    assert jnp.allclose(y_small, ref_small, atol=1e-5, rtol=1e-5)

    # Non-multiple batch with a small tile to exercise multi-step grid + padding.
    x_big = jax.random.normal(k_x2, (200, 112), jnp.float32)
    y_big = jax.block_until_ready(net_forward(x_big, params, block_b=64))
    ref_big = _reference(x_big, params)
    assert y_big.shape == (200,), y_big.shape
    assert jnp.allclose(y_big, ref_big, atol=1e-5, rtol=1e-5)

    print("KERNEL_OK")
</pallas_src>

<mosaic_0001>
module attributes {stable_mosaic.version = 11 : i64} {
  func.func @_mlp_kernel(%arg0: i32, %arg1: memref<8x112xf32, #tpu.memory_space<vmem>>, %arg2: memref<112x64xf32, #tpu.memory_space<vmem>>, %arg3: memref<1x64xf32, #tpu.memory_space<vmem>>, %arg4: memref<64x64xf32, #tpu.memory_space<vmem>>, %arg5: memref<1x64xf32, #tpu.memory_space<vmem>>, %arg6: memref<1x64xf32, #tpu.memory_space<vmem>>, %arg7: memref<1x1xf32, #tpu.memory_space<vmem>>, %arg8: memref<8x1xf32, #tpu.memory_space<vmem>>) attributes {dimension_semantics = [#tpu.dimension_semantics<parallel>], iteration_bounds = array<i64: 1>, scalar_prefetch = 0 : i64, scratch_operands = 0 : i64, tpu.core_type = #tpu.core_type<tc>, window_params = [{transform_indices = @transform_0, window_bounds = array<i64: 8, 112>}, {pipeline_mode = #tpu.pipeline_mode<synchronous>, transform_indices = @transform_1, window_bounds = array<i64: 112, 64>}, {pipeline_mode = #tpu.pipeline_mode<synchronous>, transform_indices = @transform_2, window_bounds = array<i64: 1, 64>}, {pipeline_mode = #tpu.pipeline_mode<synchronous>, transform_indices = @transform_3, window_bounds = array<i64: 64, 64>}, {pipeline_mode = #tpu.pipeline_mode<synchronous>, transform_indices = @transform_4, window_bounds = array<i64: 1, 64>}, {pipeline_mode = #tpu.pipeline_mode<synchronous>, transform_indices = @transform_5, window_bounds = array<i64: 1, 64>}, {pipeline_mode = #tpu.pipeline_mode<synchronous>, transform_indices = @transform_6, window_bounds = array<i64: 1, 1>}, {transform_indices = @transform_7, window_bounds = array<i64: 8, 1>}]} {
    %c0 = arith.constant 0 : index
    %c0_0 = arith.constant 0 : index
    %0 = vector.load %arg1[%c0, %c0_0] : memref<8x112xf32, #tpu.memory_space<vmem>>, vector<8x112xf32>
    %c0_1 = arith.constant 0 : index
    %c0_2 = arith.constant 0 : index
    %1 = vector.load %arg2[%c0_1, %c0_2] : memref<112x64xf32, #tpu.memory_space<vmem>>, vector<112x64xf32>
    %cst = arith.constant dense<0.000000e+00> : vector<8x64xf32>
    %2 = tpu.matmul %0, %1, %cst {dimension_numbers = #tpu.dot_dimension_numbers<[1], [0], [0], [1], [0, 0, 1, 1], [], []>} : vector<8x112xf32>, vector<112x64xf32>, vector<8x64xf32> -> vector<8x64xf32>
    %c0_3 = arith.constant 0 : index
    %c0_4 = arith.constant 0 : index
    %3 = vector.load %arg3[%c0_3, %c0_4] : memref<1x64xf32, #tpu.memory_space<vmem>>, vector<1x64xf32>
    %4 = vector.broadcast %3 : vector<1x64xf32> to vector<8x64xf32>
    %5 = arith.addf %2, %4 : vector<8x64xf32>
    %cst_5 = arith.constant 0.000000e+00 : f32
    %6 = vector.broadcast %cst_5 : f32 to vector<8x64xf32>
    %7 = arith.maximumf %5, %6 : vector<8x64xf32>
    %c0_6 = arith.constant 0 : index
    %c0_7 = arith.constant 0 : index
    %8 = vector.load %arg4[%c0_6, %c0_7] : memref<64x64xf32, #tpu.memory_space<vmem>>, vector<64x64xf32>
    %cst_8 = arith.constant dense<0.000000e+00> : vector<8x64xf32>
    %9 = tpu.matmul %7, %8, %cst_8 {dimension_numbers = #tpu.dot_dimension_numbers<[1], [0], [0], [1], [0, 0, 1, 1], [], []>} : vector<8x64xf32>, vector<64x64xf32>, vector<8x64xf32> -> vector<8x64xf32>
    %c0_9 = arith.constant 0 : index
    %c0_10 = arith.constant 0 : index
    %10 = vector.load %arg5[%c0_9, %c0_10] : memref<1x64xf32, #tpu.memory_space<vmem>>, vector<1x64xf32>
    %11 = vector.broadcast %10 : vector<1x64xf32> to vector<8x64xf32>
    %12 = arith.addf %9, %11 : vector<8x64xf32>
    %cst_11 = arith.constant 0.000000e+00 : f32
    %13 = vector.broadcast %cst_11 : f32 to vector<8x64xf32>
    %14 = arith.maximumf %12, %13 : vector<8x64xf32>
    %c0_12 = arith.constant 0 : index
    %c0_13 = arith.constant 0 : index
    %15 = vector.load %arg6[%c0_12, %c0_13] : memref<1x64xf32, #tpu.memory_space<vmem>>, vector<1x64xf32>
    %16 = vector.broadcast %15 : vector<1x64xf32> to vector<8x64xf32>
    %17 = arith.mulf %14, %16 : vector<8x64xf32>
    %cst_14 = arith.constant dense<0.000000e+00> : vector<8xf32>
    %18 = vector.multi_reduction <add>, %17, %cst_14 [1] : vector<8x64xf32> to vector<8xf32>
    %19 = vector.shape_cast %18 : vector<8xf32> to vector<8x1xf32>
    %c0_15 = arith.constant 0 : index
    %c0_16 = arith.constant 0 : index
    %20 = vector.load %arg7[%c0_15, %c0_16] : memref<1x1xf32, #tpu.memory_space<vmem>>, vector<1x1xf32>
    %21 = vector.broadcast %20 : vector<1x1xf32> to vector<8x1xf32>
    %22 = arith.addf %19, %21 : vector<8x1xf32>
    %23 = arith.negf %22 : vector<8x1xf32>
    %24 = math.exp %23 : vector<8x1xf32>
    %cst_17 = arith.constant 1.000000e+00 : f32
    %25 = vector.broadcast %cst_17 : f32 to vector<8x1xf32>
    %26 = arith.addf %25, %24 : vector<8x1xf32>
    %27 = arith.divf %25, %26 : vector<8x1xf32>
    %c0_18 = arith.constant 0 : index
    %c0_19 = arith.constant 0 : index
    %28 = vector.load %arg8[%c0_18, %c0_19] : memref<8x1xf32, #tpu.memory_space<vmem>>, vector<8x1xf32>
    tpu.vector_store %arg8[%c0_18, %c0_19], %27 {strides = array<i32>} : memref<8x1xf32, #tpu.memory_space<vmem>>, vector<8x1xf32>,
    return
  }
  func.func @transform_0(%arg0: i32) -> (i32, i32) {
    %c0_i32 = arith.constant 0 : i32
    %c0_i32_0 = arith.constant 0 : i32
    return %arg0, %c0_i32 : i32, i32
  }
  func.func @transform_1(%arg0: i32) -> (i32, i32) {
    %c0_i32 = arith.constant 0 : i32
    %c0_i32_0 = arith.constant 0 : i32
    %c0_i32_1 = arith.constant 0 : i32
    return %c0_i32, %c0_i32_0 : i32, i32
  }
  func.func @transform_2(%arg0: i32) -> (i32, i32) {
    %c0_i32 = arith.constant 0 : i32
    %c0_i32_0 = arith.constant 0 : i32
    %c0_i32_1 = arith.constant 0 : i32
    return %c0_i32, %c0_i32_0 : i32, i32
  }
  func.func @transform_3(%arg0: i32) -> (i32, i32) {
    %c0_i32 = arith.constant 0 : i32
    %c0_i32_0 = arith.constant 0 : i32
    %c0_i32_1 = arith.constant 0 : i32
    return %c0_i32, %c0_i32_0 : i32, i32
  }
  func.func @transform_4(%arg0: i32) -> (i32, i32) {
    %c0_i32 = arith.constant 0 : i32
    %c0_i32_0 = arith.constant 0 : i32
    %c0_i32_1 = arith.constant 0 : i32
    return %c0_i32, %c0_i32_0 : i32, i32
  }
  func.func @transform_5(%arg0: i32) -> (i32, i32) {
    %c0_i32 = arith.constant 0 : i32
    %c0_i32_0 = arith.constant 0 : i32
    %c0_i32_1 = arith.constant 0 : i32
    return %c0_i32, %c0_i32_0 : i32, i32
  }
  func.func @transform_6(%arg0: i32) -> (i32, i32) {
    %c0_i32 = arith.constant 0 : i32
    %c0_i32_0 = arith.constant 0 : i32
    %c0_i32_1 = arith.constant 0 : i32
    return %c0_i32, %c0_i32_0 : i32, i32
  }
  func.func @transform_7(%arg0: i32) -> (i32, i32) {
    %c0_i32 = arith.constant 0 : i32
    %c0_i32_0 = arith.constant 0 : i32
    return %arg0, %c0_i32 : i32, i32
  }
}

</mosaic_0001>

<llo_original>
// kernel: tpu_custom_call.1
$region0: #{tpu_custom_call.1}
  #allocation0 [shape = 'u32[]', space=smem, size = 0x4, offset = 0x4, fixed_abs, tag = 'smem constant byte address 0x4 - core index']
  #allocation1 [shape = 'u32[144,128]{1,0:T(1,128)}', space=vmem, size = 0x12000, scoped, tag = 'internal scratch']
  #allocation2 [shape = 'f32[1,1]{1,0:T(1,128)S(1)}', space=vmem, size = 0x200, scoped, tag = 'scoped memory for tpu_custom_call.1']
  %s0 = inlined_call_operand.vmem [shape: f32[8,112], index: 0, kind: input, shape index: {}]
  %s1 = inlined_call_operand.vmem [shape: f32[112,64], index: 1, kind: input, shape index: {}]
  %s2 = inlined_call_operand.vmem [shape: f32[1,64], index: 2, kind: input, shape index: {}]
  %s3 = inlined_call_operand.vmem [shape: f32[64,64], index: 3, kind: input, shape index: {}]
  %s4 = inlined_call_operand.vmem [shape: f32[1,64], index: 4, kind: input, shape index: {}]
  %s5 = inlined_call_operand.vmem [shape: f32[1,64], index: 5, kind: input, shape index: {}]
  %s6 = inlined_call_operand.<no memory space> [shape: f32[1,1], index: 6, kind: input, shape index: {}]
  %s7 = inlined_call_operand.vmem [shape: f32[8,1], index: 7, kind: output, shape index: {}]
  %s8 = sld [smem:[#allocation0]]
  $region38: #{tpu_custom_call.1} parent=0
    _
  %s10 = ssub.s32 1, %s8
  %s11 = scalar_select 0, %s10, %s8
  %v12 = vstv %s6
  %13 = vst [vmem:[#allocation2] sm:$0x1] %v12
  // Predicated region
  $region2: #{tpu_custom_call.1} parent=0 // pred_check
    _
  $region3: #{tpu_custom_call.1} parent=0 // pred_check_branch
    %15 = sbr.rel (0) target = $region5
  $region4: #{tpu_custom_call.1} parent=0 // pred_region
    _
  $region5: #{tpu_custom_call.1} parent=0 // pred_fallthru
    _
  // Predicated region
  $region6: #{tpu_custom_call.1} parent=0 // pred_check
    _
  $region7: #{tpu_custom_call.1} parent=0 // pred_check_branch
    %17 = sbr.rel (0) target = $region9
  $region8: #{tpu_custom_call.1} parent=0 // pred_region
    _
  $region9: #{tpu_custom_call.1} parent=0 // pred_fallthru
    _
  // Predicated region
  $region10: #{tpu_custom_call.1} parent=0 // pred_check
    _
  $region11: #{tpu_custom_call.1} parent=0 // pred_check_branch
    %19 = sbr.rel (0) target = $region13
  $region12: #{tpu_custom_call.1} parent=0 // pred_region
    _
  $region13: #{tpu_custom_call.1} parent=0 // pred_fallthru
    _
  // Predicated region
  $region14: #{tpu_custom_call.1} parent=0 // pred_check
    _
  $region15: #{tpu_custom_call.1} parent=0 // pred_check_branch
    %21 = sbr.rel (0) target = $region17
  $region16: #{tpu_custom_call.1} parent=0 // pred_region
    _
  $region17: #{tpu_custom_call.1} parent=0 // pred_fallthru
    _
  // Predicated region
  $region18: #{tpu_custom_call.1} parent=0 // pred_check
    _
  $region19: #{tpu_custom_call.1} parent=0 // pred_check_branch
    %23 = sbr.rel (0) target = $region21
  $region20: #{tpu_custom_call.1} parent=0 // pred_region
    _
  $region21: #{tpu_custom_call.1} parent=0 // pred_fallthru
    _
  // Predicated region
  $region22: #{tpu_custom_call.1} parent=0 // pred_check
    _
  $region23: #{tpu_custom_call.1} parent=0 // pred_check_branch
    %25 = sbr.rel (0) target = $region25
  $region24: #{tpu_custom_call.1} parent=0 // pred_region
    _
  $region25: #{tpu_custom_call.1} parent=0 // pred_fallthru
    _
  // Predicated region
  $region26: #{tpu_custom_call.1} parent=0 // pred_check
    _
  $region27: #{tpu_custom_call.1} parent=0 // pred_check_branch
    %27 = sbr.rel (0) target = $region29
  $region28: #{tpu_custom_call.1} parent=0 // pred_region
    _
  $region29: #{tpu_custom_call.1} parent=0 // pred_fallthru
    _
  %v28 = vld [vmem:[%s0] sm:$0xff]
  %v29 = vld [vmem:[%s1] sm:$0xff]
  %v30 = vld [vmem:[%s1 + $0x8] sm:$0xff]
  %v31 = vld [vmem:[%s1 + $0x10] sm:$0xff]
  %v32 = vld [vmem:[%s1 + $0x18] sm:$0xff]
  %v33 = vld [vmem:[%s1 + $0x20] sm:$0xff]
  %v34 = vld [vmem:[%s1 + $0x28] sm:$0xff]
  %v35 = vld [vmem:[%s1 + $0x30] sm:$0xff]
  %v36 = vld [vmem:[%s1 + $0x38] sm:$0xff]
  %v37 = vld [vmem:[%s1 + $0x40] sm:$0xff]
  %v38 = vld [vmem:[%s1 + $0x48] sm:$0xff]
  %v39 = vld [vmem:[%s1 + $0x50] sm:$0xff]
  %v40 = vld [vmem:[%s1 + $0x58] sm:$0xff]
  %v41 = vld [vmem:[%s1 + $0x60] sm:$0xff]
  %v42 = vld [vmem:[%s1 + $0x68] sm:$0xff]
  %v43 = vld [vmem:[%s2] sm:$0x1]
  %v45 = vlaneseq
  %v46 = vshrl.u32 %v45, 7
  %v47 = vsub.s32 0, %v46
  %v48 = vrot.slane %v43, %v47
  %vm50 = vcmask 916480
  %v52 = vsel %vm50, %v28, 0
  %54 = vmatprep.subr.mxu0 0.0
  %55 = vmatpush1.msra.mxu0 %v29
  %56 = vmatprep.subr.mxu0 0.0
  %57 = vmatpush1.msra.mxu0 %v30
  %58 = vmatprep.subr.mxu0 0.0
  %59 = vmatpush1.msra.mxu0 %v31
  %60 = vmatprep.subr.mxu0 0.0
  %61 = vmatpush1.msra.mxu0 %v32
  %62 = vmatprep.subr.mxu0 0.0
  %63 = vmatpush1.msra.mxu0 %v33
  %64 = vmatprep.subr.mxu0 0.0
  %65 = vmatpush1.msra.mxu0 %v34
  %66 = vmatprep.subr.mxu0 0.0
  %67 = vmatpush1.msra.mxu0 %v35
  %68 = vmatprep.subr.mxu0 0.0
  %69 = vmatpush1.msra.mxu0 %v36
  %70 = vmatprep.subr.mxu0 0.0
  %71 = vmatpush1.msra.mxu0 %v37
  %72 = vmatprep.subr.mxu0 0.0
  %73 = vmatpush1.msra.mxu0 %v38
  %74 = vmatprep.subr.mxu0 0.0
  %75 = vmatpush1.msra.mxu0 %v39
  %76 = vmatprep.subr.mxu0 0.0
  %77 = vmatpush1.msra.mxu0 %v40
  %78 = vmatprep.subr.mxu0 0.0
  %79 = vmatpush1.msra.mxu0 %v41
  %80 = vmatprep.subr.mxu0 0.0
  %81 = vmatpush1.msra.mxu0 %v42
  %82 = vmatprep.subr.mxu0 0.0
  %83 = vmatpush1.msra.mxu0 0.0
  %84 = vmatprep.subr.mxu0 0.0
  %85 = vmatpush1.msra.mxu0 0.0
  %86 = vmatprep.subr.mxu0 0.0
  %87 = vmatpush1.msra.mxu0 0.0
  %88 = vmatprep.subr.mxu0 0.0
  %89 = vmatpush1.msra.mxu0 0.0
  %90 = vmatprep.subr.mxu0 0.0
  %91 = vmatpush1.msra.mxu0 0.0
  %92 = vmatprep.subr.mxu0 0.0
  %93 = vmatpush1.msra.mxu0 0.0
  %94 = vmatprep.subr.mxu0 0.0
  %95 = vmatpush1.msra.mxu0 0.0
  %96 = vmatprep.subr.mxu0 0.0
  %97 = vmatpush1.msra.mxu0 0.0
  %98 = vmatprep.subr.mxu0 0.0
  %99 = vmatpush1.msra.mxu0 0.0
  %100 = vmatprep.subr.mxu0 0.0
  %101 = vmatpush1.msra.mxu0 0.0
  %102 = vmatprep.subr.mxu0 0.0
  %103 = vmatpush1.msra.mxu0 0.0
  %104 = vmatprep.subr.mxu0 0.0
  %105 = vmatpush1.msra.mxu0 0.0
  %106 = vmatprep.subr.mxu0 0.0
  %107 = vmatpush1.msra.mxu0 0.0
  %108 = vmatprep.subr.mxu0 0.0
  %109 = vmatpush1.msra.mxu0 0.0
  %110 = vmatprep.subr.mxu0 0.0
  %111 = vmatpush1.msra.mxu0 0.0
  %112 = vmatprep.subr.mxu0 0.0
  %113 = vmatpush1.msra.mxu0 0.0
  %114 = vmatprep.subr.mxu0 0.0
  %115 = vmatpush1.msra.mxu0 0.0
  %116 = vmatprep.subr.mxu0 0.0
  %117 = vmatpush1.msra.mxu0 0.0
  %118 = vmatprep.mubr.f32.mxu0 0.0
  %119 = vmatmul.mubr.f32.gmra.mrb[0].mxu0 %v52
  %v120 = vpop.f32.mrb[0].mxu0
  %v121 = vadd.f32 %v48, %v120
  %v122 = vpop.f32.mrb[0].mxu0
  %123 = vdwg.mxu0
  %v124 = vmax.f32 %v121, 0.0
  %v125 = vld [vmem:[%s3] sm:$0xff]
  %v126 = vld [vmem:[%s3 + $0x8] sm:$0xff]
  %v127 = vld [vmem:[%s3 + $0x10] sm:$0xff]
  %v128 = vld [vmem:[%s3 + $0x18] sm:$0xff]
  %v129 = vld [vmem:[%s3 + $0x20] sm:$0xff]
  %v130 = vld [vmem:[%s3 + $0x28] sm:$0xff]
  %v131 = vld [vmem:[%s3 + $0x30] sm:$0xff]
  %v132 = vld [vmem:[%s3 + $0x38] sm:$0xff]
  %v133 = vld [vmem:[%s4] sm:$0x1]
  %v135 = vlaneseq
  %v136 = vshrl.u32 %v135, 7
  %v137 = vsub.s32 0, %v136
  %v138 = vrot.slane %v133, %v137
  %vm140 = vcmask 523264
  %v142 = vsel %vm140, %v124, 0
  %144 = vmatprep.subr.mxu0 0.0
  %145 = vmatpush1.msra.mxu0 %v125
  %146 = vmatprep.subr.mxu0 0.0
  %147 = vmatpush1.msra.mxu0 %v126
  %148 = vmatprep.subr.mxu0 0.0
  %149 = vmatpush1.msra.mxu0 %v127
  %150 = vmatprep.subr.mxu0 0.0
  %151 = vmatpush1.msra.mxu0 %v128
  %152 = vmatprep.subr.mxu0 0.0
  %153 = vmatpush1.msra.mxu0 %v129
  %154 = vmatprep.subr.mxu0 0.0
  %155 = vmatpush1.msra.mxu0 %v130
  %156 = vmatprep.subr.mxu0 0.0
  %157 = vmatpush1.msra.mxu0 %v131
  %158 = vmatprep.subr.mxu0 0.0
  %159 = vmatpush1.msra.mxu0 %v132
  %160 = vmatprep.subr.mxu0 0.0
  %161 = vmatpush1.msra.mxu0 0.0
  %162 = vmatprep.subr.mxu0 0.0
  %163 = vmatpush1.msra.mxu0 0.0
  %164 = vmatprep.subr.mxu0 0.0
  %165 = vmatpush1.msra.mxu0 0.0
  %166 = vmatprep.subr.mxu0 0.0
  %167 = vmatpush1.msra.mxu0 0.0
  %168 = vmatprep.subr.mxu0 0.0
  %169 = vmatpush1.msra.mxu0 0.0
  %170 = vmatprep.subr.mxu0 0.0
  %171 = vmatpush1.msra.mxu0 0.0
  %172 = vmatprep.subr.mxu0 0.0
  %173 = vmatpush1.msra.mxu0 0.0
  %174 = vmatprep.subr.mxu0 0.0
  %175 = vmatpush1.msra.mxu0 0.0
  %176 = vmatprep.subr.mxu0 0.0
  %177 = vmatpush1.msra.mxu0 0.0
  %178 = vmatprep.subr.mxu0 0.0
  %179 = vmatpush1.msra.mxu0 0.0
  %180 = vmatprep.subr.mxu0 0.0
  %181 = vmatpush1.msra.mxu0 0.0
  %182 = vmatprep.subr.mxu0 0.0
  %183 = vmatpush1.msra.mxu0 0.0
  %184 = vmatprep.subr.mxu0 0.0
  %185 = vmatpush1.msra.mxu0 0.0
  %186 = vmatprep.subr.mxu0 0.0
  %187 = vmatpush1.msra.mxu0 0.0
  %188 = vmatprep.subr.mxu0 0.0
  %189 = vmatpush1.msra.mxu0 0.0
  %190 = vmatprep.subr.mxu0 0.0
  %191 = vmatpush1.msra.mxu0 0.0
  %192 = vmatprep.subr.mxu0 0.0
  %193 = vmatpush1.msra.mxu0 0.0
  %194 = vmatprep.subr.mxu0 0.0
  %195 = vmatpush1.msra.mxu0 0.0
  %196 = vmatprep.subr.mxu0 0.0
  %197 = vmatpush1.msra.mxu0 0.0
  %198 = vmatprep.subr.mxu0 0.0
  %199 = vmatpush1.msra.mxu0 0.0
  %200 = vmatprep.subr.mxu0 0.0
  %201 = vmatpush1.msra.mxu0 0.0
  %202 = vmatprep.subr.mxu0 0.0
  %203 = vmatpush1.msra.mxu0 0.0
  %204 = vmatprep.subr.mxu0 0.0
  %205 = vmatpush1.msra.mxu0 0.0
  %206 = vmatprep.subr.mxu0 0.0
  %207 = vmatpush1.msra.mxu0 0.0
  %208 = vmatprep.mubr.f32.mxu0 0.0
  %209 = vmatmul.mubr.f32.gmra.mrb[0].mxu0 %v142
  %v210 = vpop.f32.mrb[0].mxu0
  %v211 = vadd.f32 %v138, %v210
  %v212 = vpop.f32.mrb[0].mxu0
  %213 = vdwg.mxu0
  %v214 = vmax.f32 %v211, 0.0
  %v215 = vld [vmem:[%s5] sm:$0x1]
  %v217 = vlaneseq
  %v218 = vshrl.u32 %v217, 7
  %v219 = vsub.s32 0, %v218
  %v220 = vrot.slane %v215, %v219
  %v222 = vmul.f32 %v214, %v220
  %v223 = vsel %vm140, %v222, 0.0
  %224 = vadd.xlane.f32.xlu0 %v223
  %v225 = vpop.xlane.xlu0 %224
  %v226 = vld [vmem:[#allocation2] sm:$0x1]
  %v228 = vlaneseq
  %v229 = vshrl.u32 %v228, 7
  %v230 = vsub.s32 0, %v229
  %v231 = vrot.slane %v226, %v230
  %v233 = vadd.f32 %v225, %v231
  %v234 = vxor.u32 %v233, 2147483648
  %v235 = vmul.f32 %v234, 1.442695
  %v236 = vpow.pop %v235
  %v237 = vadd.f32 %v236, 1.0
  %v238 = vrcp.pop %v237
  %v239 = vmul.f32 1.0, %v238
  %vm240 = vcmask 7168
  %241 = vst.msk [vmem:[%s7] sm:$0xff] %vm240, %v239
  // Predicated region
  $region30: #{tpu_custom_call.1} parent=0 // pred_check
    _
  $region31: #{tpu_custom_call.1} parent=0 // pred_check_branch
    %243 = sbr.rel (0) target = $region33
  $region32: #{tpu_custom_call.1} parent=0 // pred_region
    _
  $region33: #{tpu_custom_call.1} parent=0 // pred_fallthru
    _
  // Predicated region
  $region34: #{tpu_custom_call.1} parent=0 // pred_check
    _
  $region35: #{tpu_custom_call.1} parent=0 // pred_check_branch
    %245 = sbr.rel (0) target = $region37
  $region36: #{tpu_custom_call.1} parent=0 // pred_region
    _
  $region37: #{tpu_custom_call.1} parent=0 // pred_fallthru
    _

</llo_original>
